<compile_context>
chip_gen: v7x
topology: tpu7x:2x2x1
jax: 0.10.0
libtpu: 0.0.40
codegen_flags: <defaults>
</compile_context>

<pallas_src>
import functools

import jax
import jax.numpy as jnp
from jax import lax
from jax.experimental import pallas as pl
from jax.experimental.pallas import tpu as pltpu

NEG_SENTINEL = -1e30   # working score for padding / picked / suppressed boxes
ACTIVE_THRESH = -1e29  # anything above this is still a live candidate


def _softnms_kernel(scores_ref, boxes_ref, coords_ref,
                    picked_idx_ref, picked_score_ref, count_ref,
                    *, nms_thresh, score_thresh, max_picks):
    # scores_ref : (8, L) f32 VMEM, padding lanes = NEG_SENTINEL
    # boxes_ref  : (4, 8, L) f32 VMEM, planes = x1, y1, x2, y2 (sublane-dense)
    # coords_ref : (4*n_pad,) f32 SMEM, box-major [x1,y1,x2,y2] per box
    # picked_idx_ref   : (max_picks,) i32 SMEM out (flat box index per pick)
    # picked_score_ref : (max_picks,) f32 SMEM out (decayed score at pick time)
    # count_ref        : (1,) i32 SMEM out (number of picks made)
    L = scores_ref.shape[1]
    n_pad = 8 * L

    # loop-invariant vectors (hoisted before the pick loop; ~6 vregs at L=128)
    x1v = boxes_ref[0]
    y1v = boxes_ref[1]
    x2v = boxes_ref[2]
    y2v = boxes_ref[3]
    areas = (x2v - x1v + 1.0) * (y2v - y1v + 1.0)  # +1 ("TO_REMOVE") convention

    row = lax.broadcasted_iota(jnp.int32, (8, L), 0)
    col = lax.broadcasted_iota(jnp.int32, (8, L), 1)
    idx2d = row * L + col                           # flat box index per lane

    def _argmax(w):
        m = jnp.max(w)                                      # XLU reduce 1
        pick = jnp.min(jnp.where(w >= m, idx2d, n_pad))     # XLU reduce 2
        return m, pick

    w0 = scores_ref[...]
    m0, p0 = _argmax(w0)

    def cond(carry):
        i, m, _, _ = carry
        return (i < max_picks) & (m > ACTIVE_THRESH) & (m >= score_thresh)

    def body(carry):
        i, m, pick, w = carry

        # record the pick: two scalar SMEM stores
        picked_idx_ref[i] = pick
        picked_score_ref[i] = m

        # picked-box coordinates via 4 adjacent scalar SMEM loads
        c0 = 4 * pick
        px1 = coords_ref[c0]
        py1 = coords_ref[c0 + 1]
        px2 = coords_ref[c0 + 2]
        py2 = coords_ref[c0 + 3]
        parea = (px2 - px1 + 1.0) * (py2 - py1 + 1.0)

        # IoU of the picked box vs. everything (vectorized over lanes)
        ix1 = jnp.maximum(x1v, px1)
        iy1 = jnp.maximum(y1v, py1)
        ix2 = jnp.minimum(x2v, px2)
        iy2 = jnp.minimum(y2v, py2)
        iw = jnp.maximum(ix2 - ix1 + 1.0, 0.0)
        ih = jnp.maximum(iy2 - iy1 + 1.0, 0.0)
        inter = iw * ih
        union = areas + parea - inter

        # EUP reciprocal starts immediately; threshold compare stays on the VPU
        # so it does not wait for the EUP result.
        rcp = pl.reciprocal(union, approx=True)
        suppress = inter > nms_thresh * union
        # clamp so approx-rcp overshoot (iou slightly > 1) can't flip the sign
        weight = jnp.where(suppress, jnp.maximum(1.0 - inter * rcp, 0.0), 1.0)

        # linear Soft-NMS decay, fused with suppression + pick removal;
        # the new slab stays in vregs and feeds the next argmax directly.
        decayed = w * weight
        keep = (w > ACTIVE_THRESH) & (idx2d != pick) & (decayed >= score_thresh)
        new_w = jnp.where(keep, decayed, NEG_SENTINEL)

        m2, p2 = _argmax(new_w)     # next pick; reused by cond (no recompute)
        return i + 1, m2, p2, new_w

    num, _, _, _ = lax.while_loop(cond, body, (jnp.int32(0), m0, p0, w0))
    count_ref[0] = num


def soft_nms_pallas(boxes, scores, *, nms_thresh, score_thresh, max_picks):
    """boxes: (N, 4) xyxy f32, scores: (N,) f32.

    Returns (picked_idx (K,) i32, picked_score (K,) f32, count (1,) i32),
    K = max_picks; entries with position >= count are invalid (masked by
    the caller — the kernel does not initialize them)."""
    n = boxes.shape[0]
    n_pad = max(1024, ((n + 1023) // 1024) * 1024)   # multiple of 8*128
    L = n_pad // 8
    k = int(max_picks)

    boxes_f = boxes.astype(jnp.float32)
    # sublane-dense coordinate planes for the vectorized IoU
    coords_planes = jnp.zeros((4, n_pad), jnp.float32).at[:, :n].set(boxes_f.T)
    boxes_v = coords_planes.reshape(4, 8, L)
    # single packed box-major SMEM copy for the scalar picked-box reads
    coords_flat = (
        jnp.zeros((n_pad, 4), jnp.float32).at[:n].set(boxes_f).reshape(-1))
    scores_flat = jnp.full((n_pad,), NEG_SENTINEL, jnp.float32)
    scores_flat = scores_flat.at[:n].set(scores.astype(jnp.float32))
    scores_2d = scores_flat.reshape(8, L)

    kernel = functools.partial(
        _softnms_kernel,
        nms_thresh=float(nms_thresh),
        score_thresh=float(score_thresh),
        max_picks=k)

    vmem = pl.BlockSpec(memory_space=pltpu.MemorySpace.VMEM)
    smem = pl.BlockSpec(memory_space=pltpu.MemorySpace.SMEM)

    picked_idx, picked_score, count = pl.pallas_call(
        kernel,
        out_shape=(
            jax.ShapeDtypeStruct((k,), jnp.int32),
            jax.ShapeDtypeStruct((k,), jnp.float32),
            jax.ShapeDtypeStruct((1,), jnp.int32),
        ),
        in_specs=[vmem, vmem, smem],
        out_specs=(smem, smem, smem),
        cost_estimate=pl.CostEstimate(
            flops=30 * k * n_pad,
            transcendentals=k * n_pad,
            bytes_accessed=24 * n_pad),
    )(scores_2d, boxes_v, coords_flat)

    return picked_idx, picked_score, count


class BoxListSoftNMSPallas:
    """JAX/Pallas port of BoxListSoftNMS.forward (BoxList -> raw arrays)."""

    def __init__(self, thresh, max_proposals, score_field, score_thresh):
        self.thresh = thresh
        self.score_field = score_field
        self.input_mode = 'xyxy'
        if max_proposals == -1:
            max_proposals = 10000000000
        self.max_proposals = max_proposals
        self.score_thresh = score_thresh

    def __call__(self, boxes, scores):
        n = boxes.shape[0]
        k = int(min(self.max_proposals, n))
        picked_idx, picked_score, count = soft_nms_pallas(
            boxes, scores, nms_thresh=self.thresh,
            score_thresh=self.score_thresh, max_picks=k)

        # --- plain-JAX glue: picks are already in pick order, no argsort ---
        # TODO(synk): variable-length BoxList output has no fixed-shape Pallas
        # equivalent; return a fixed (k,) slab plus a validity mask.
        valid = jnp.arange(k, dtype=jnp.int32) < count[0]
        safe_idx = jnp.where(valid, picked_idx, 0)
        kept_boxes = jnp.where(valid[:, None], boxes[safe_idx], 0.0)
        kept_scores = jnp.where(valid, picked_score, 0.0)
        return kept_boxes, kept_scores, valid


if __name__ == "__main__":
    key = jax.random.PRNGKey(0)
    k_c, k_s, k_sc = jax.random.split(key, 3)

    n_boxes = 50
    # deterministic synthetic boxes (xyxy) and scores
    centers = jax.random.uniform(k_c, (n_boxes, 2), minval=10.0, maxval=110.0)
    sizes = jax.random.uniform(k_s, (n_boxes, 2), minval=8.0, maxval=40.0)
    boxes = jnp.concatenate(
        [centers - sizes / 2.0, centers + sizes / 2.0], axis=1
    ).astype(jnp.float32)
    scores = jax.random.uniform(k_sc, (n_boxes,), dtype=jnp.float32)

    module = BoxListSoftNMSPallas(
        thresh=0.5, max_proposals=20, score_field='scores', score_thresh=0.05)

    kept_boxes, kept_scores, kept_valid = module(boxes, scores)
    jax.block_until_ready((kept_boxes, kept_scores, kept_valid))
    print("KERNEL_OK")
</pallas_src>

<mosaic_0001>
module attributes {stable_mosaic.version = 11 : i64} {
  func.func @_softnms_kernel(%arg0: memref<8x128xf32, #tpu.memory_space<vmem>>, %arg1: memref<4x8x128xf32, #tpu.memory_space<vmem>>, %arg2: memref<4096xf32, #tpu.memory_space<smem>>, %arg3: memref<20xi32, #tpu.memory_space<smem>>, %arg4: memref<20xf32, #tpu.memory_space<smem>>, %arg5: memref<1xi32, #tpu.memory_space<smem>>) attributes {dimension_semantics = [], scalar_prefetch = 0 : i64, scratch_operands = 0 : i64, tpu.core_type = #tpu.core_type<tc>} {
    %c0 = arith.constant 0 : index
    %c0_0 = arith.constant 0 : index
    %c0_1 = arith.constant 0 : index
    %0 = vector.load %arg1[%c0, %c0_0, %c0_1] : memref<4x8x128xf32, #tpu.memory_space<vmem>>, vector<1x8x128xf32>
    %1 = vector.shape_cast %0 : vector<1x8x128xf32> to vector<8x128xf32>
    %c1 = arith.constant 1 : index
    %c0_2 = arith.constant 0 : index
    %c0_3 = arith.constant 0 : index
    %2 = vector.load %arg1[%c1, %c0_2, %c0_3] : memref<4x8x128xf32, #tpu.memory_space<vmem>>, vector<1x8x128xf32>
    %3 = vector.shape_cast %2 : vector<1x8x128xf32> to vector<8x128xf32>
    %c2 = arith.constant 2 : index
    %c0_4 = arith.constant 0 : index
    %c0_5 = arith.constant 0 : index
    %4 = vector.load %arg1[%c2, %c0_4, %c0_5] : memref<4x8x128xf32, #tpu.memory_space<vmem>>, vector<1x8x128xf32>
    %5 = vector.shape_cast %4 : vector<1x8x128xf32> to vector<8x128xf32>
    %c3 = arith.constant 3 : index
    %c0_6 = arith.constant 0 : index
    %c0_7 = arith.constant 0 : index
    %6 = vector.load %arg1[%c3, %c0_6, %c0_7] : memref<4x8x128xf32, #tpu.memory_space<vmem>>, vector<1x8x128xf32>
    %7 = vector.shape_cast %6 : vector<1x8x128xf32> to vector<8x128xf32>
    %8 = arith.subf %5, %1 : vector<8x128xf32>
    %cst = arith.constant 1.000000e+00 : f32
    %9 = vector.broadcast %cst : f32 to vector<8x128xf32>
    %10 = arith.addf %8, %9 : vector<8x128xf32>
    %11 = arith.subf %7, %3 : vector<8x128xf32>
    %cst_8 = arith.constant 1.000000e+00 : f32
    %12 = vector.broadcast %cst_8 : f32 to vector<8x128xf32>
    %13 = arith.addf %11, %12 : vector<8x128xf32>
    %14 = arith.mulf %10, %13 : vector<8x128xf32>
    %15 = tpu.iota {dimensions = array<i32: 0>} : vector<8x128xi32>
    %16 = tpu.iota {dimensions = array<i32: 1>} : vector<8x128xi32>
    %c128_i32 = arith.constant 128 : i32
    %17 = vector.broadcast %c128_i32 : i32 to vector<8x128xi32>
    %18 = arith.muli %15, %17 : vector<8x128xi32>
    %19 = arith.addi %18, %16 : vector<8x128xi32>
    %c0_9 = arith.constant 0 : index
    %c0_10 = arith.constant 0 : index
    %20 = vector.load %arg0[%c0_9, %c0_10] : memref<8x128xf32, #tpu.memory_space<vmem>>, vector<8x128xf32>
    %21 = vector.shape_cast %20 : vector<8x128xf32> to vector<1x8x128xf32>
    %cst_11 = arith.constant dense<0xFF800000> : vector<1xf32>
    %22 = vector.multi_reduction <maximumf>, %21, %cst_11 [1, 2] : vector<1x8x128xf32> to vector<1xf32>
    %23 = vector.shape_cast %22 : vector<1xf32> to vector<1x1x1xf32>
    %24 = vector.extract %23[0, 0, 0] : f32 from vector<1x1x1xf32>
    %25 = vector.broadcast %24 : f32 to vector<8x128xf32>
    %26 = arith.cmpf oge, %20, %25 : vector<8x128xf32>
    %c1024_i32 = arith.constant 1024 : i32
    %27 = vector.broadcast %c1024_i32 : i32 to vector<8x128xi32>
    %28 = arith.select %26, %19, %27 : vector<8x128xi1>, vector<8x128xi32>
    %29 = vector.shape_cast %28 : vector<8x128xi32> to vector<1x8x128xi32>
    %cst_12 = arith.constant dense<2147483647> : vector<1xi32>
    %30 = vector.multi_reduction <minsi>, %29, %cst_12 [1, 2] : vector<1x8x128xi32> to vector<1xi32>
    %31 = vector.shape_cast %30 : vector<1xi32> to vector<1x1x1xi32>
    %32 = vector.extract %31[0, 0, 0] : i32 from vector<1x1x1xi32>
    %c0_i32 = arith.constant 0 : i32
    %33:4 = scf.while (%arg6 = %c0_i32, %arg7 = %24, %arg8 = %32, %arg9 = %20) : (i32, f32, i32, vector<8x128xf32>) -> (i32, f32, i32, vector<8x128xf32>) {
      %c20_i32 = arith.constant 20 : i32
      %35 = arith.cmpi slt, %arg6, %c20_i32 : i32
      %cst_14 = arith.constant -1.000000e+29 : f32
      %36 = arith.cmpf ogt, %arg7, %cst_14 : f32
      %37 = arith.andi %35, %36 : i1
      %cst_15 = arith.constant 5.000000e-02 : f32
      %38 = arith.cmpf oge, %arg7, %cst_15 : f32
      %39 = arith.andi %37, %38 : i1
      scf.condition(%39) %arg6, %arg7, %arg8, %arg9 : i32, f32, i32, vector<8x128xf32>
    } do {
    ^bb0(%arg6: i32, %arg7: f32, %arg8: i32, %arg9: vector<8x128xf32>):
      %35 = arith.index_cast %arg6 : i32 to index
      %36 = memref.load %arg3[%35] : memref<20xi32, #tpu.memory_space<smem>>
      memref.store %arg8, %arg3[%35] : memref<20xi32, #tpu.memory_space<smem>>
      %37 = arith.index_cast %arg6 : i32 to index
      %38 = memref.load %arg4[%37] : memref<20xf32, #tpu.memory_space<smem>>
      memref.store %arg7, %arg4[%37] : memref<20xf32, #tpu.memory_space<smem>>
      %c4_i32 = arith.constant 4 : i32
      %39 = arith.muli %c4_i32, %arg8 : i32
      %40 = arith.index_cast %39 : i32 to index
      %41 = memref.load %arg2[%40] : memref<4096xf32, #tpu.memory_space<smem>>
      %c1_i32 = arith.constant 1 : i32
      %42 = arith.addi %39, %c1_i32 : i32
      %43 = arith.index_cast %42 : i32 to index
      %44 = memref.load %arg2[%43] : memref<4096xf32, #tpu.memory_space<smem>>
      %c2_i32 = arith.constant 2 : i32
      %45 = arith.addi %39, %c2_i32 : i32
      %46 = arith.index_cast %45 : i32 to index
      %47 = memref.load %arg2[%46] : memref<4096xf32, #tpu.memory_space<smem>>
      %c3_i32 = arith.constant 3 : i32
      %48 = arith.addi %39, %c3_i32 : i32
      %49 = arith.index_cast %48 : i32 to index
      %50 = memref.load %arg2[%49] : memref<4096xf32, #tpu.memory_space<smem>>
      %51 = arith.subf %47, %41 : f32
      %cst_14 = arith.constant 1.000000e+00 : f32
      %52 = arith.addf %51, %cst_14 : f32
      %53 = arith.subf %50, %44 : f32
      %cst_15 = arith.constant 1.000000e+00 : f32
      %54 = arith.addf %53, %cst_15 : f32
      %55 = arith.mulf %52, %54 : f32
      %56 = vector.broadcast %41 : f32 to vector<8x128xf32>
      %57 = arith.maximumf %1, %56 : vector<8x128xf32>
      %58 = vector.broadcast %44 : f32 to vector<8x128xf32>
      %59 = arith.maximumf %3, %58 : vector<8x128xf32>
      %60 = vector.broadcast %47 : f32 to vector<8x128xf32>
      %61 = arith.minimumf %5, %60 : vector<8x128xf32>
      %62 = vector.broadcast %50 : f32 to vector<8x128xf32>
      %63 = arith.minimumf %7, %62 : vector<8x128xf32>
      %64 = arith.subf %61, %57 : vector<8x128xf32>
      %cst_16 = arith.constant 1.000000e+00 : f32
      %65 = vector.broadcast %cst_16 : f32 to vector<8x128xf32>
      %66 = arith.addf %64, %65 : vector<8x128xf32>
      %cst_17 = arith.constant 0.000000e+00 : f32
      %67 = vector.broadcast %cst_17 : f32 to vector<8x128xf32>
      %68 = arith.maximumf %66, %67 : vector<8x128xf32>
      %69 = arith.subf %63, %59 : vector<8x128xf32>
      %cst_18 = arith.constant 1.000000e+00 : f32
      %70 = vector.broadcast %cst_18 : f32 to vector<8x128xf32>
      %71 = arith.addf %69, %70 : vector<8x128xf32>
      %cst_19 = arith.constant 0.000000e+00 : f32
      %72 = vector.broadcast %cst_19 : f32 to vector<8x128xf32>
      %73 = arith.maximumf %71, %72 : vector<8x128xf32>
      %74 = arith.mulf %68, %73 : vector<8x128xf32>
      %75 = vector.broadcast %55 : f32 to vector<8x128xf32>
      %76 = arith.addf %14, %75 : vector<8x128xf32>
      %77 = arith.subf %76, %74 : vector<8x128xf32>
      %78 = tpu.reciprocal %77 {approx = true} : vector<8x128xf32> -> vector<8x128xf32>
      %cst_20 = arith.constant 5.000000e-01 : f32
      %79 = vector.broadcast %cst_20 : f32 to vector<8x128xf32>
      %80 = arith.mulf %79, %77 : vector<8x128xf32>
      %81 = arith.cmpf ogt, %74, %80 : vector<8x128xf32>
      %82 = arith.mulf %74, %78 : vector<8x128xf32>
      %cst_21 = arith.constant 1.000000e+00 : f32
      %83 = vector.broadcast %cst_21 : f32 to vector<8x128xf32>
      %84 = arith.subf %83, %82 : vector<8x128xf32>
      %cst_22 = arith.constant 0.000000e+00 : f32
      %85 = vector.broadcast %cst_22 : f32 to vector<8x128xf32>
      %86 = arith.maximumf %84, %85 : vector<8x128xf32>
      %cst_23 = arith.constant 1.000000e+00 : f32
      %87 = vector.broadcast %cst_23 : f32 to vector<8x128xf32>
      %88 = arith.select %81, %86, %87 : vector<8x128xi1>, vector<8x128xf32>
      %89 = arith.mulf %arg9, %88 : vector<8x128xf32>
      %cst_24 = arith.constant -1.000000e+29 : f32
      %90 = vector.broadcast %cst_24 : f32 to vector<8x128xf32>
      %91 = arith.cmpf ogt, %arg9, %90 : vector<8x128xf32>
      %92 = vector.broadcast %arg8 : i32 to vector<8x128xi32>
      %93 = arith.cmpi ne, %19, %92 : vector<8x128xi32>
      %94 = arith.andi %91, %93 : vector<8x128xi1>
      %cst_25 = arith.constant 5.000000e-02 : f32
      %95 = vector.broadcast %cst_25 : f32 to vector<8x128xf32>
      %96 = arith.cmpf oge, %89, %95 : vector<8x128xf32>
      %97 = arith.andi %94, %96 : vector<8x128xi1>
      %cst_26 = arith.constant -1.000000e+30 : f32
      %98 = vector.broadcast %cst_26 : f32 to vector<8x128xf32>
      %99 = arith.select %97, %89, %98 : vector<8x128xi1>, vector<8x128xf32>
      %100 = vector.shape_cast %99 : vector<8x128xf32> to vector<1x8x128xf32>
      %cst_27 = arith.constant dense<0xFF800000> : vector<1xf32>
      %101 = vector.multi_reduction <maximumf>, %100, %cst_27 [1, 2] : vector<1x8x128xf32> to vector<1xf32>
      %102 = vector.shape_cast %101 : vector<1xf32> to vector<1x1x1xf32>
      %103 = vector.extract %102[0, 0, 0] : f32 from vector<1x1x1xf32>
      %104 = vector.broadcast %103 : f32 to vector<8x128xf32>
      %105 = arith.cmpf oge, %99, %104 : vector<8x128xf32>
      %c1024_i32_28 = arith.constant 1024 : i32
      %106 = vector.broadcast %c1024_i32_28 : i32 to vector<8x128xi32>
      %107 = arith.select %105, %19, %106 : vector<8x128xi1>, vector<8x128xi32>
      %108 = vector.shape_cast %107 : vector<8x128xi32> to vector<1x8x128xi32>
      %cst_29 = arith.constant dense<2147483647> : vector<1xi32>
      %109 = vector.multi_reduction <minsi>, %108, %cst_29 [1, 2] : vector<1x8x128xi32> to vector<1xi32>
      %110 = vector.shape_cast %109 : vector<1xi32> to vector<1x1x1xi32>
      %111 = vector.extract %110[0, 0, 0] : i32 from vector<1x1x1xi32>
      %c1_i32_30 = arith.constant 1 : i32
      %112 = arith.addi %arg6, %c1_i32_30 : i32
      scf.yield %112, %103, %111, %99 : i32, f32, i32, vector<8x128xf32>
    }
    %c0_13 = arith.constant 0 : index
    %34 = memref.load %arg5[%c0_13] : memref<1xi32, #tpu.memory_space<smem>>
    memref.store %33#0, %arg5[%c0_13] : memref<1xi32, #tpu.memory_space<smem>>
    return
  }
}

</mosaic_0001>

<llo_original>
// kernel: tpu_custom_call.1
$region0: #{tpu_custom_call.1}
  #allocation0 [shape = 'u32[]', space=smem, size = 0x4, offset = 0x4, fixed_abs, tag = 'smem constant byte address 0x4 - core index']
  #allocation1 [shape = 'u32[144,128]{1,0:T(1,128)}', space=vmem, size = 0x12000, scoped, tag = 'internal scratch']
  %s0 = inlined_call_operand.hbm [shape: f32[8,128], index: 0, kind: input, shape index: {}]
  %s1 = inlined_call_operand.hbm [shape: f32[4,8,128], index: 1, kind: input, shape index: {}]
  %s2 = inlined_call_operand.hbm [shape: f32[4096], index: 2, kind: input, shape index: {}]
  %s3 = inlined_call_operand.hbm [shape: s32[20], index: 3, kind: output, shape index: {0}]
  %s4 = inlined_call_operand.hbm [shape: f32[20], index: 4, kind: output, shape index: {1}]
  %s5 = inlined_call_operand.hbm [shape: s32[1], index: 5, kind: output, shape index: {2}]
  %6 = xla_tuple %s3, %s4, %s5
  %s7 = sld [smem:[#allocation0]]
  $region57: #{tpu_custom_call.1} parent=0
    _
  %s9 = ssub.s32 1, %s7
  %s10 = scalar_select 0, %s9, %s7
  $region1: #{tpu_custom_call.1} parent=0
    #allocation2 [shape = 'u8[4096]{0}', space=vmem, size = 0x1000, scoped, tag = 'input window, operand 0, single buffered']
    #allocation3 [shape = 's32[1]{0}', space=sflag, size = 0x4, scoped, tag = 'scoped memory for tpu_custom_call.1']
    #allocation4 [shape = 's32[1]{0}', space=sflag, size = 0x4, scoped, tag = 'scoped memory for tpu_custom_call.1']
    #allocation5 [shape = 's32[1]{0}', space=sflag, size = 0x4, scoped, tag = 'scoped memory for tpu_custom_call.1']
    #allocation6 [shape = 'u8[16384]{0}', space=vmem, size = 0x4000, scoped, tag = 'input window, operand 1, single buffered']
    #allocation7 [shape = 's32[1]{0}', space=sflag, size = 0x4, scoped, tag = 'scoped memory for tpu_custom_call.1']
    #allocation8 [shape = 'u8[16384]{0}', space=smem, size = 0x4000, scoped, tag = 'input window, operand 2, single buffered']
    #allocation9 [shape = 'u8[512]{0}', space=smem, size = 0x200, scoped, tag = 'output window, operand 0, single buffered']
    #allocation10 [shape = 'u8[512]{0}', space=smem, size = 0x200, scoped, tag = 'output window, operand 1, single buffered']
    #allocation11 [shape = 's32[1]{0}', space=sflag, size = 0x4, scoped, tag = 'scoped memory for tpu_custom_call.1']
    #allocation12 [shape = 'u8[512]{0}', space=smem, size = 0x200, scoped, tag = 'output window, operand 2, single buffered']
    %11 = vsyncpa [#allocation3], 0
    %12 = vsyncpa [#allocation7], 0
    %13 = vsyncpa [#allocation4], 0
    %14 = vsyncpa [#allocation5], 0
    %15 = vsyncpa [#allocation11], 0
    // Predicated region
    $region2: #{tpu_custom_call.1} parent=1 // pred_check
      _
    $region3: #{tpu_custom_call.1} parent=1 // pred_check_branch
      %17 = sbr.rel (0) target = $region5
    $region4: #{tpu_custom_call.1} parent=1 // pred_region
      %s19 = ssub.s32 128, 128
      %20 = vsyncadd [#allocation3], %s19
      %s22 = sshll.u32 [#allocation2], 4
      %s23 = int_to_ptr.vmem [resolvable:$true] %s22
      %25 = dma.hbm_to_vmem [thread:$0]  %s0, 128, %s23, [#allocation3]
    $region5: #{tpu_custom_call.1} parent=1 // pred_fallthru
      _
    // Predicated region
    $region6: #{tpu_custom_call.1} parent=1 // pred_check
      _
    $region7: #{tpu_custom_call.1} parent=1 // pred_check_branch
      %27 = sbr.rel (0) target = $region9
    $region8: #{tpu_custom_call.1} parent=1 // pred_region
      %s29 = ssub.s32 512, 512
      %30 = vsyncadd [#allocation7], %s29
      %s31 = sshll.u32 [#allocation6], 4
      %s32 = int_to_ptr.vmem [resolvable:$true] %s31
      %37 = dma.hbm_to_vmem [thread:$0]  %s1, 512, %s32, [#allocation7], 128, 128, 8
    $region9: #{tpu_custom_call.1} parent=1 // pred_fallthru
      _
    // Predicated region
    $region10: #{tpu_custom_call.1} parent=1 // pred_check
      _
    $region11: #{tpu_custom_call.1} parent=1 // pred_check_branch
      %39 = sbr.rel (0) target = $region13
    $region12: #{tpu_custom_call.1} parent=1 // pred_region
      %s41 = ssub.s32 512, 512
      %42 = vsyncadd [#allocation4], %s41
      %45 = dma.hbm_to_smem %s2, 512, [#allocation8], [#allocation4]
    $region13: #{tpu_custom_call.1} parent=1 // pred_fallthru
      _
    // Predicated region
    $region14: #{tpu_custom_call.1} parent=1 // pred_check
      _
    $region15: #{tpu_custom_call.1} parent=1 // pred_check_branch
      %47 = sbr.rel (0) target = $region17
    $region16: #{tpu_custom_call.1} parent=1 // pred_region
      %48 = dma.done [#allocation3], 128
    $region17: #{tpu_custom_call.1} parent=1 // pred_fallthru
      _
    // Predicated region
    $region18: #{tpu_custom_call.1} parent=1 // pred_check
      _
    $region19: #{tpu_custom_call.1} parent=1 // pred_check_branch
      %50 = sbr.rel (0) target = $region21
    $region20: #{tpu_custom_call.1} parent=1 // pred_region
      %51 = dma.done [#allocation7], 512
    $region21: #{tpu_custom_call.1} parent=1 // pred_fallthru
      _
    // Predicated region
    $region22: #{tpu_custom_call.1} parent=1 // pred_check
      _
    $region23: #{tpu_custom_call.1} parent=1 // pred_check_branch
      %53 = sbr.rel (0) target = $region25
    $region24: #{tpu_custom_call.1} parent=1 // pred_region
      %54 = dma.done [#allocation4], 512
    $region25: #{tpu_custom_call.1} parent=1 // pred_fallthru
      _
    %55 = sfence
    %v56 = vld [vmem:[#allocation6] sm:$0xff]
    %s57 = scalar_lea.vmem [#allocation6], 8
    %v58 = vld [vmem:[%s57] sm:$0xff]
    %s59 = scalar_lea.vmem [#allocation6], 16
    %v60 = vld [vmem:[%s59] sm:$0xff]
    %s61 = scalar_lea.vmem [#allocation6], 24
    %v62 = vld [vmem:[%s61] sm:$0xff]
    %v63 = vsub.f32 %v60, %v56
    %v64 = vadd.f32 %v63, 1.0
    %v65 = vsub.f32 %v62, %v58
    %v66 = vadd.f32 %v65, 1.0
    %v67 = vmul.f32 %v64, %v66
    %v68 = vlaneseq
    %v69 = vshrl.u32 %v68, 7
    %v70 = vlaneseq
    %v71 = vand.u32 %v70, 127
    %v72 = vmul.u32 %v69, 128
    %v73 = vadd.s32 %v72, %v71
    %v74 = vld [vmem:[#allocation2] sm:$0xff]
    %75 = vmax.xlane.f32.xlu0 %v74
    %v76 = vpop.xlane.xlu0 %75
    %v77 = vrot.slane %v76, 4
    %v78 = vmax.f32 %v76, %v77
    %v79 = vrot.slane %v78, 2
    %v80 = vmax.f32 %v78, %v79
    %v81 = vrot.slane %v80, 1
    %v82 = vmax.f32 %v80, %v81
    %s83 = vtos %v82
    %v84 = vstv %s83
    %vm85 = vcmp.ge.f32.partialorder %v74, %v84
    %v86 = vsel %vm85, %v73, 1024
    %v87 = vand.u32 %v86, 65535
    %v88 = vshra.s32 %v86, 16
    %v89 = vcvt.s32.f32 %v87
    %v90 = vcvt.s32.f32 %v88
    %91 = vmin.xlane.f32.xlu0 %v90
    %v92 = vpop.xlane.xlu0 %91
    %vm93 = vcmp.eq.f32.partialorder %v90, %v92
    %v94 = vsel %vm93, %v89, inf
    %95 = vmin.xlane.f32.xlu0 %v94
    %v96 = vpop.xlane.xlu0 %95
    %v97 = vcvt.f32.s32 %v96
    %v98 = vcvt.f32.s32 %v92
    %v99 = vshll.u32 %v98, 16
    %v100 = vadd.s32 %v99, %v97
    %v101 = vrot.slane %v100, 4
    %vm102 = vcmp.lt.s32.totalorder %v100, %v101
    %v103 = vsel %vm102, %v100, %v101
    %v104 = vrot.slane %v103, 2
    %vm105 = vcmp.lt.s32.totalorder %v103, %v104
    %v106 = vsel %vm105, %v103, %v104
    %v107 = vrot.slane %v106, 1
    %vm108 = vcmp.lt.s32.totalorder %v106, %v107
    %v109 = vsel %vm108, %v106, %v107
    %s110 = vtos %v109
    // While loop
    $region26: #{tpu_custom_call.1} parent=1 // loop_pre_header
      _
    $region27: #{tpu_custom_call.1} parent=1 // loop_header
      %s112 = sphi 0, %s211
      %s113 = sphi %s83, %s183
      %s114 = sphi %s110, %s210
      %v115 = vphi %v74, %v174
      %p116 = scmp.lt.s32.totalorder %s112, 20
      %p117 = scmp.gt.f32.partialorder %s113, -1e+29
      %p118 = pnand %p116, %p117
      %p119 = pneg %p118
      %p120 = scmp.ge.f32.partialorder %s113, 0.05
      %p121 = pnand %p119, %p120
      %p122 = pneg %p121
    $region28: #{tpu_custom_call.1} parent=1 // loop_header_branch
      %124 = sbr.rel (%p121) target = $region32
    $region29: #{tpu_custom_call.1} parent=1 // loop_body
      %s125 = scalar_lea.smem [#allocation9], %s112
      %126 = sst [smem:[%s125]] %s114
      %s127 = scalar_lea.smem [#allocation10], %s112
      %128 = sst [smem:[%s127]] %s113
      %s129 = smul.u32 %s114, 4
      %s130 = sld [smem:[#allocation8 + %s129]]
      %s131 = sadd.s32 %s129, 1
      %s132 = sld [smem:[#allocation8 + %s131]]
      %s133 = sadd.s32 %s129, 2
      %s134 = sld [smem:[#allocation8 + %s133]]
      %s135 = sadd.s32 %s129, 3
      %s136 = sld [smem:[#allocation8 + %s135]]
      %s137 = ssub.f32 %s134, %s130
      %s138 = sadd.f32 %s137, 1.0
      %s139 = ssub.f32 %s136, %s132
      %s140 = sadd.f32 %s139, 1.0
      %s141 = smul.f32 %s138, %s140
      %v142 = vstv %s130
      %v143 = vmax.f32 %v56, %v142
      %v144 = vstv %s132
      %v145 = vmax.f32 %v58, %v144
      %v146 = vstv %s134
      %v147 = vmin.f32 %v60, %v146
      %v148 = vstv %s136
      %v149 = vmin.f32 %v62, %v148
      %v150 = vsub.f32 %v147, %v143
      %v151 = vadd.f32 %v150, 1.0
      %v152 = vmax.f32 %v151, 0.0
      %v153 = vsub.f32 %v149, %v145
      %v154 = vadd.f32 %v153, 1.0
      %v155 = vmax.f32 %v154, 0.0
      %v156 = vmul.f32 %v152, %v155
      %v157 = vstv %s141
      %v158 = vadd.f32 %v67, %v157
      %v159 = vsub.f32 %v158, %v156
      %v160 = vrcp.pop %v159
      %v161 = vmul.f32 %v159, 0.5
      %vm162 = vcmp.gt.f32.partialorder %v156, %v161
      %v163 = vmul.f32 %v156, %v160
      %v164 = vsub.f32 1.0, %v163
      %v165 = vmax.f32 %v164, 0.0
      %v166 = vsel %vm162, %v165, 1.0
      %v167 = vmul.f32 %v115, %v166
      %vm168 = vcmp.gt.f32.partialorder %v115, -1e+29
      %v169 = vstv %s114
      %vm170 = vcmp.ne.s32.totalorder %v73, %v169
      %vm171 = vmand %vm168, %vm170
      %vm172 = vcmp.ge.f32.partialorder %v167, 0.05
      %vm173 = vmand %vm171, %vm172
      %v174 = vsel %vm173, %v167, -1e+30
      %175 = vmax.xlane.f32.xlu0 %v174
      %v176 = vpop.xlane.xlu0 %175
      %v177 = vrot.slane %v176, 4
      %v178 = vmax.f32 %v176, %v177
      %v179 = vrot.slane %v178, 2
      %v180 = vmax.f32 %v178, %v179
      %v181 = vrot.slane %v180, 1
      %v182 = vmax.f32 %v180, %v181
      %s183 = vtos %v182
      %v184 = vstv %s183
      %vm185 = vcmp.ge.f32.partialorder %v174, %v184
      %v186 = vsel %vm185, %v73, 1024
      %v187 = vand.u32 %v186, 65535
      %v188 = vshra.s32 %v186, 16
      %v189 = vcvt.s32.f32 %v187
      %v190 = vcvt.s32.f32 %v188
      %191 = vmin.xlane.f32.xlu0 %v190
      %v192 = vpop.xlane.xlu0 %191
      %vm193 = vcmp.eq.f32.partialorder %v190, %v192
      %v194 = vsel %vm193, %v189, inf
      %195 = vmin.xlane.f32.xlu0 %v194
      %v196 = vpop.xlane.xlu0 %195
      %v197 = vcvt.f32.s32 %v196
      %v198 = vcvt.f32.s32 %v192
      %v199 = vshll.u32 %v198, 16
      %v200 = vadd.s32 %v199, %v197
      %v201 = vrot.slane %v200, 4
      %vm202 = vcmp.lt.s32.totalorder %v200, %v201
      %v203 = vsel %vm202, %v200, %v201
      %v204 = vrot.slane %v203, 2
      %vm205 = vcmp.lt.s32.totalorder %v203, %v204
      %v206 = vsel %vm205, %v203, %v204
      %v207 = vrot.slane %v206, 1
      %vm208 = vcmp.lt.s32.totalorder %v206, %v207
      %v209 = vsel %vm208, %v206, %v207
      %s210 = vtos %v209
      %s211 = sadd.s32 %s112, 1
    $region30: #{tpu_custom_call.1} parent=1 // loop_footer
      _
    $region31: #{tpu_custom_call.1} parent=1 // loop_footer_branch
      %111 = sbr.rel target = $region27
    $region32: #{tpu_custom_call.1} parent=1 // loop_exit
      _
    %s212 = scalar_lea.smem [#allocation12], 0
    %213 = sst [smem:[%s212]] %s112
    // Predicated region
    $region33: #{tpu_custom_call.1} parent=1 // pred_check
      _
    $region34: #{tpu_custom_call.1} parent=1 // pred_check_branch
      %215 = sbr.rel (0) target = $region36
    $region35: #{tpu_custom_call.1} parent=1 // pred_region
      %s217 = ssub.s32 16, 16
      %218 = vsyncadd [#allocation5], %s217
      %221 = dma.smem_to_hbm [#allocation9], 16, %s3, [#allocation5]
    $region36: #{tpu_custom_call.1} parent=1 // pred_fallthru
      _
    // Predicated region
    $region37: #{tpu_custom_call.1} parent=1 // pred_check
      _
    $region38: #{tpu_custom_call.1} parent=1 // pred_check_branch
      %223 = sbr.rel (0) target = $region40
    $region39: #{tpu_custom_call.1} parent=1 // pred_region
      %s225 = ssub.s32 16, 16
      %226 = vsyncadd [#allocation11], %s225
      %229 = dma.smem_to_hbm [#allocation10], 16, %s4, [#allocation11]
    $region40: #{tpu_custom_call.1} parent=1 // pred_fallthru
      _
    // Predicated region
    $region41: #{tpu_custom_call.1} parent=1 // pred_check
      _
    $region42: #{tpu_custom_call.1} parent=1 // pred_check_branch
      %231 = sbr.rel (0) target = $region44
    $region43: #{tpu_custom_call.1} parent=1 // pred_region
      %s233 = ssub.s32 16, 16
      %234 = vsyncadd [#allocation11], %s233
      %237 = dma.smem_to_hbm [#allocation12], 16, %s5, [#allocation11]
    $region44: #{tpu_custom_call.1} parent=1 // pred_fallthru
      _
    // Predicated region
    $region45: #{tpu_custom_call.1} parent=1 // pred_check
      _
    $region46: #{tpu_custom_call.1} parent=1 // pred_check_branch
      %239 = sbr.rel (0) target = $region48
    $region47: #{tpu_custom_call.1} parent=1 // pred_region
      %240 = dma.done [#allocation5], 16
    $region48: #{tpu_custom_call.1} parent=1 // pred_fallthru
      _
    // Predicated region
    $region49: #{tpu_custom_call.1} parent=1 // pred_check
      _
    $region50: #{tpu_custom_call.1} parent=1 // pred_check_branch
      %242 = sbr.rel (0) target = $region52
    $region51: #{tpu_custom_call.1} parent=1 // pred_region
      %243 = dma.done [#allocation11], 16
    $region52: #{tpu_custom_call.1} parent=1 // pred_fallthru
      _
    // Predicated region
    $region53: #{tpu_custom_call.1} parent=1 // pred_check
      _
    $region54: #{tpu_custom_call.1} parent=1 // pred_check_branch
      %245 = sbr.rel (0) target = $region56
    $region55: #{tpu_custom_call.1} parent=1 // pred_region
      %246 = dma.done [#allocation11], 16
    $region56: #{tpu_custom_call.1} parent=1 // pred_fallthru
      _
    %247 = sfence
    %248 = vsyncpa [#allocation3], 1
    %249 = vsyncpa [#allocation7], 1
    %250 = vsyncpa [#allocation4], 1
    %251 = vsyncpa [#allocation5], 1
    %252 = vsyncpa [#allocation11], 1

</llo_original>
